<compile_context>
chip_gen: v5e
topology: v5e:2x2
jax: 0.10.0
libtpu: 0.0.40
codegen_flags: <defaults>
</compile_context>

<pallas_src>
import functools

import jax
import jax.numpy as jnp
import numpy as np
from jax.experimental import pallas as pl
from jax.experimental.pallas import tpu as pltpu


_CHUNK = 8                    # f32 sublane count: one (8, H*W) chunk = whole vregs
_TILE_N_MAX = 512             # samples per grid step (amortizes per-step fixed cost)
_N_EDGE_PARAMS = 7            # x1, y1, ex, ey, ex/len2, ey/len2, slope
_VMEM_TILE_BUDGET = 12 << 20  # bytes for double-buffered tgt + pm blocks (fits all gens)


def _round_up(x, m):
    return ((x + m - 1) // m) * m


def _fold_lanes(a, chunk, hw):
    """(chunk, hw) -> (chunk, 128) partial sum using only vreg-aligned VPU adds."""
    if hw % 128 == 0 and hw >= 128:
        out = a[:, :128]
        for off in range(128, hw, 128):
            out = out + a[:, off:off + 128]
        return out
    # Fallback for HW not a lane multiple: per-row sums placed in lane 0.
    rows = jnp.sum(a, axis=1, keepdims=True)
    lane = jax.lax.broadcasted_iota(jnp.int32, (chunk, 128), 1)
    return jnp.where(lane == 0, jnp.broadcast_to(rows, (chunk, 128)), 0.0)


# ----------------------------------------------------------------------------- kernel
def _raster_dice_kernel(ep_ref, tgt_ref, pm_ref, sums_ref, *,
                        num_verts, inv_smoothness, width, n_valid, chunk,
                        mask_invalid):
    b = pl.program_id(0)
    tile_n, hw = pm_ref.shape
    num_chunks = tile_n // chunk
    npar = _N_EDGE_PARAMS

    # Lane-dense pixel coordinates recovered from the flattened pixel index.
    idx = jax.lax.broadcasted_iota(jnp.int32, (chunk, hw), 1)
    if (width & (width - 1)) == 0:
        shift = int(width).bit_length() - 1
        px = (idx & (width - 1)).astype(jnp.float32)
        py = (idx >> shift).astype(jnp.float32)
    else:
        px = (idx % width).astype(jnp.float32)
        py = (idx // width).astype(jnp.float32)

    sub = jax.lax.broadcasted_iota(jnp.int32, (chunk, 1), 0)   # row index inside chunk

    half_pos = 0.5 * float(inv_smoothness)                     # folds sigmoid's z/2
    half_neg = -half_pos

    def chunk_body(c, carry):
        acc_i, acc_p = carry
        r0 = pl.multiple_of(c * chunk, chunk)

        ep = ep_ref[pl.ds(r0, chunk), :]        # (chunk, 7V) precomputed edge params
        tgt = tgt_ref[pl.ds(r0, chunk), :]      # (chunk, HW)

        def bc(col):  # one explicit lane-broadcast per parameter per edge
            return jnp.broadcast_to(ep[:, col:col + 1], (chunk, hw))

        d2_min = jnp.full((chunk, hw), 1e30, dtype=jnp.float32)
        inside = jnp.zeros((chunk, hw), dtype=jnp.bool_)

        # Crossing predicate for vertex 0 (reused for the last edge too).
        y_b = bc(1)
        yg = y_b > py
        y0_b, yg0 = y_b, yg

        # V is small and static -> unrolled Python loop; all per-pixel math is
        # VPU multiply/add/compare, no divides, exactly one broadcast per param.
        for i in range(num_verts):
            j = (i + 1) % num_verts
            base = npar * i

            x1b = bc(base + 0)
            exb = bc(base + 2)
            eyb = bc(base + 3)
            exnb = bc(base + 4)     # ex / len^2
            eynb = bc(base + 5)     # ey / len^2
            slb = bc(base + 6)      # ex / ey (guarded)

            dxp = px - x1b
            dyp = py - y_b

            # Closest-point parameter (inv_len2 folded into exn/eyn).
            t = jnp.clip(dxp * exnb + dyp * eynb, 0.0, 1.0)
            ddx = dxp - t * exb
            ddy = dyp - t * eyb
            d2_min = jnp.minimum(d2_min, ddx * ddx + ddy * ddy)

            # Even/odd crossing test; `px < x_int` rewritten as `dxp < dyp*slope`.
            if j == 0:
                y_nb, yg_n = y0_b, yg0
            else:
                y_nb = bc(npar * j + 1)
                yg_n = y_nb > py
            cond1 = yg != yg_n
            cross = jnp.logical_and(cond1, dxp < dyp * slb)
            inside = jnp.logical_xor(inside, cross)

            y_b, yg = y_nb, yg_n

        # sigmoid(s * d2 * inv_s) == 0.5*tanh(0.5*s*d2*inv_s) + 0.5  (tanh -> EUP).
        z = jnp.where(inside, half_pos, half_neg) * d2_min
        pm = 0.5 * jnp.tanh(z) + 0.5
        pm = jnp.clip(pm, 1e-5, 0.99999)          # torch.clamp(pred_masks, 1e-5, 0.99999)
        pm_ref[pl.ds(r0, chunk), :] = pm.astype(pm_ref.dtype)

        acc_i = acc_i + pm * tgt                  # padded tgt rows are zero already
        if mask_invalid:
            # Only emitted when batch padding exists: keep padded rows out of sum(p).
            row = b * tile_n + r0 + sub
            validb = jnp.broadcast_to((row < n_valid).astype(jnp.float32), (chunk, hw))
            acc_p = acc_p + pm * validb
        else:
            acc_p = acc_p + pm
        return acc_i, acc_p

    zeros = jnp.zeros((chunk, hw), dtype=jnp.float32)
    acc_i, acc_p = jax.lax.fori_loop(0, num_chunks, chunk_body, (zeros, zeros))

    # Packed per-block partial sums: two aligned (chunk,128) unmasked stores;
    # the final (tiny) reduction happens in XLA, so the grid axis stays "parallel".
    sums_ref[0, 0:chunk, :] = _fold_lanes(acc_i, chunk, hw)
    sums_ref[0, chunk:2 * chunk, :] = _fold_lanes(acc_p, chunk, hw)


# ---------------------------------------------------------------------------- wrapper
def _edge_params(verts):
    """verts: (N, V, 2) pixel coords -> (N, V*7) per-edge params (computed in XLA)."""
    nxt = jnp.roll(verts, shift=-1, axis=1)
    x1 = verts[..., 0]
    y1 = verts[..., 1]
    x2 = nxt[..., 0]
    y2 = nxt[..., 1]
    ex = x2 - x1
    ey = y2 - y1
    inv_len2 = 1.0 / jnp.maximum(ex * ex + ey * ey, 1e-12)
    exn = ex * inv_len2
    eyn = ey * inv_len2
    denom = jnp.where(jnp.abs(ey) < 1e-12, 1e-12, ey)
    slope = ex / denom
    ep = jnp.stack([x1, y1, ex, ey, exn, eyn, slope], axis=-1)   # (N, V, 7)
    return ep.reshape(verts.shape[0], -1).astype(jnp.float32)


def _rasterize_and_reduce(verts, tgt_masks, inv_smoothness, H, W):
    """verts: (N, V, 2) in pixel coords; tgt_masks: (N, H, W) float32."""
    N, V, _ = verts.shape
    HW = H * W

    # Tile sizing: aim for >=2 grid steps (v7x megacore shards the 'parallel' axis
    # across both TCs; extra per-step cost is negligible on v5e/v6e), cap at 512
    # samples/step, and respect a VMEM budget for the double-buffered tgt/pm blocks
    # (keeps us inside the 16/32 MiB default scoped limits on all generations).
    tile_n = _round_up(max(1, -(-N // 2)), _CHUNK)
    tile_n = min(tile_n, _TILE_N_MAX)
    max_tile_vmem = max(_CHUNK, (_VMEM_TILE_BUDGET // (16 * HW)) // _CHUNK * _CHUNK)
    tile_n = max(_CHUNK, min(tile_n, max_tile_vmem))
    n_pad = _round_up(N, tile_n)
    grid_n = n_pad // tile_n

    ep = _edge_params(verts)                                   # (N, 7V)
    tgt_flat = tgt_masks.reshape(N, HW).astype(jnp.float32)    # lane-dense flatten
    tsum = jnp.sum(tgt_flat)                                   # acc_t carry dropped from kernel

    if n_pad != N:
        pad = ((0, n_pad - N), (0, 0))
        ep = jnp.pad(ep, pad)
        tgt_flat = jnp.pad(tgt_flat, pad)

    kernel = functools.partial(
        _raster_dice_kernel, num_verts=V, inv_smoothness=float(inv_smoothness),
        width=W, n_valid=N, chunk=_CHUNK, mask_invalid=(n_pad != N))

    pm, sums = pl.pallas_call(
        kernel,
        grid=(grid_n,),
        in_specs=[
            pl.BlockSpec((tile_n, _N_EDGE_PARAMS * V), lambda b: (b, 0)),  # edge params
            pl.BlockSpec((tile_n, HW), lambda b: (b, 0)),                  # targets
        ],
        out_specs=(
            pl.BlockSpec((tile_n, HW), lambda b: (b, 0)),                  # pred masks
            pl.BlockSpec((1, 2 * _CHUNK, 128), lambda b: (b, 0, 0)),       # packed partials
        ),
        out_shape=(
            jax.ShapeDtypeStruct((n_pad, HW), jnp.float32),
            jax.ShapeDtypeStruct((grid_n, 2 * _CHUNK, 128), jnp.float32),
        ),
        compiler_params=pltpu.CompilerParams(dimension_semantics=("parallel",)),
    )(ep, tgt_flat)

    inter = jnp.sum(sums[:, :_CHUNK])        # sum(pred * tgt)
    psum = jnp.sum(sums[:, _CHUNK:])         # sum(pred), padding rows excluded in-kernel
    pred_masks = pm[:N].reshape(N, H, W)
    return pred_masks, inter, psum, tsum


# ------------------------------------------------------------------------ module glue
class MaskRasterizationLossPallas:
    """JAX/Pallas port of MaskRasterizationLoss (dice loss, dict-target path)."""

    def __init__(self, resolutions=((16, 16),), inv_smoothness=0.1):
        # register_buffer('rasterize_at', ...) equivalent (deterministic init).
        self.rasterize_at = np.array(resolutions, dtype=np.int64).reshape(-1, 2)
        self.inv_smoothness = float(inv_smoothness)
        self.offset = 0.5
        # ClippingStrategy laplacian buffer (unused on the dict-target path).
        self.laplacian = jnp.array([-1, -1, -1, -1, 8, -1, -1, -1, -1],
                                   jnp.float32).reshape(1, 1, 3, 3)

    def __call__(self, images, preds, targets, lid=0):
        resolution = self.rasterize_at[lid]
        H, W = int(resolution[0]), int(resolution[1])

        # preds * float(resolution[1]) - self.offset   (matches the torch line)
        verts = preds.astype(jnp.float32) * float(W) - self.offset

        tgt = targets["mask"].astype(jnp.float32)
        tgt_hw = tgt.reshape(tgt.shape[0], H, W)                 # drop channel dim

        pred_masks, inter, psum, tsum = _rasterize_and_reduce(
            verts, tgt_hw, self.inv_smoothness, H, W)

        smooth = 1.0                                             # dice_loss (whole-batch flatten)
        loss = 1.0 - (2.0 * inter + smooth) / (psum + tsum + smooth)
        # Original torch forward returns (loss, targets); pred_masks added for testing.
        return loss, targets, pred_masks[:, None, :, :]


# --------------------------------------------------------------------------- reference
def _reference_forward(preds, tgt_nchw, H, W, inv_smoothness, offset=0.5):
    verts = preds.astype(jnp.float32) * float(W) - offset
    nxt = jnp.roll(verts, shift=-1, axis=1)
    x1 = verts[..., 0][:, :, None, None]
    y1 = verts[..., 1][:, :, None, None]
    x2 = nxt[..., 0][:, :, None, None]
    y2 = nxt[..., 1][:, :, None, None]
    py = jnp.arange(H, dtype=jnp.float32)[None, None, :, None]
    px = jnp.arange(W, dtype=jnp.float32)[None, None, None, :]
    ex, ey = x2 - x1, y2 - y1
    inv_len2 = 1.0 / jnp.maximum(ex * ex + ey * ey, 1e-12)
    dxp, dyp = px - x1, py - y1
    t = jnp.clip((dxp * ex + dyp * ey) * inv_len2, 0.0, 1.0)
    ddx, ddy = dxp - t * ex, dyp - t * ey
    d2_min = (ddx * ddx + ddy * ddy).min(axis=1)
    cond1 = (y1 > py) != (y2 > py)
    denom = jnp.where(jnp.abs(ey) < 1e-12, 1e-12, ey)
    slope = ex / denom
    # Same even/odd formulation as the kernel (px < x1 + dyp*slope <=> dxp < dyp*slope).
    inside = (jnp.sum(cond1 & (dxp < dyp * slope), axis=1) % 2) == 1
    pm = jax.nn.sigmoid(jnp.where(inside, 1.0, -1.0) * d2_min * inv_smoothness)
    pm = jnp.clip(pm, 1e-5, 0.99999)
    tgt = tgt_nchw.reshape(tgt_nchw.shape[0], H, W).astype(jnp.float32)
    smooth = 1.0
    inter = jnp.sum(pm * tgt)
    loss = 1.0 - (2.0 * inter + smooth) / (jnp.sum(pm) + jnp.sum(tgt) + smooth)
    return loss, pm


# -------------------------------------------------------------------------------- main
if __name__ == "__main__":
    N, V, H, W = 2, 8, 16, 16

    key = jax.random.PRNGKey(0)
    k_pred, k_tgt = jax.random.split(key)
    # Polygon vertices in normalized [0.1, 0.9] coordinates.
    preds = jax.random.uniform(k_pred, (N, V, 2), jnp.float32, 0.1, 0.9)
    # Binary target masks, NCHW with C=1.
    target_mask = jax.random.bernoulli(k_tgt, 0.5, (N, 1, H, W)).astype(jnp.float32)
    targets = {"mask": target_mask}

    module = MaskRasterizationLossPallas(resolutions=((H, W),), inv_smoothness=0.1)
    loss, _, pred_masks = module(None, preds, targets, lid=0)
    loss = jax.block_until_ready(loss)
    pred_masks = jax.block_until_ready(pred_masks)

    ref_loss, ref_pm = _reference_forward(preds, target_mask, H, W, 0.1)
    np.testing.assert_allclose(np.asarray(pred_masks[:, 0]), np.asarray(ref_pm),
                               rtol=1e-4, atol=1e-4)
    np.testing.assert_allclose(np.asarray(loss), np.asarray(ref_loss),
                               rtol=1e-4, atol=1e-4)

    print("KERNEL_OK")
</pallas_src>

<mosaic_0001>
module attributes {stable_mosaic.version = 11 : i64} {
  func.func @_raster_dice_kernel(%arg0: i32, %arg1: memref<8x56xf32, #tpu.memory_space<vmem>>, %arg2: memref<8x256xf32, #tpu.memory_space<vmem>>, %arg3: memref<8x256xf32, #tpu.memory_space<vmem>>, %arg4: memref<1x16x128xf32, #tpu.memory_space<vmem>>) attributes {dimension_semantics = [#tpu.dimension_semantics<parallel>], iteration_bounds = array<i64: 1>, scalar_prefetch = 0 : i64, scratch_operands = 0 : i64, tpu.core_type = #tpu.core_type<tc>, window_params = [{transform_indices = @transform_0, window_bounds = array<i64: 8, 56>}, {transform_indices = @transform_1, window_bounds = array<i64: 8, 256>}, {transform_indices = @transform_2, window_bounds = array<i64: 8, 256>}, {transform_indices = @transform_3, window_bounds = array<i64: 1, 16, 128>}]} {
    %0 = tpu.iota {dimensions = array<i32: 1>} : vector<8x256xi32>
    %c15_i32 = arith.constant 15 : i32
    %1 = vector.broadcast %c15_i32 : i32 to vector<8x256xi32>
    %2 = arith.andi %0, %1 : vector<8x256xi32>
    %3 = arith.sitofp %2 : vector<8x256xi32> to vector<8x256xf32>
    %c4_i32 = arith.constant 4 : i32
    %4 = vector.broadcast %c4_i32 : i32 to vector<8x256xi32>
    %5 = arith.shrsi %0, %4 : vector<8x256xi32>
    %6 = arith.sitofp %5 : vector<8x256xi32> to vector<8x256xf32>
    %7 = tpu.iota {dimensions = array<i32: 0>} : vector<8x1xi32>
    %cst = arith.constant 0.000000e+00 : f32
    %8 = vector.broadcast %cst : f32 to vector<8x256xf32>
    %c0_i32 = arith.constant 0 : i32
    %c8_i32 = arith.constant 8 : i32
    %9 = arith.muli %c0_i32, %c8_i32 : i32
    %10 = tpu.assume_multiple %9, 8 : i32
    %11 = arith.index_cast %10 : i32 to index
    %c0 = arith.constant 0 : index
    %12 = vector.load %arg1[%11, %c0] : memref<8x56xf32, #tpu.memory_space<vmem>>, vector<8x56xf32>
    %13 = arith.index_cast %10 : i32 to index
    %c0_0 = arith.constant 0 : index
    %14 = vector.load %arg2[%13, %c0_0] : memref<8x256xf32, #tpu.memory_space<vmem>>, vector<8x256xf32>
    %cst_1 = arith.constant 1.000000e+30 : f32
    %15 = vector.broadcast %cst_1 : f32 to vector<8x256xf32>
    %false = arith.constant false
    %16 = vector.broadcast %false : i1 to vector<8x256xi1>
    %17 = vector.extract_strided_slice %12 {offsets = [0, 1], sizes = [8, 1], strides = [1, 1]} : vector<8x56xf32> to vector<8x1xf32>
    %18 = vector.shape_cast %17 : vector<8x1xf32> to vector<8x1xf32>
    %19 = vector.broadcast %18 : vector<8x1xf32> to vector<8x256xf32>
    %20 = arith.cmpf ogt, %19, %6 : vector<8x256xf32>
    %21 = vector.extract_strided_slice %12 {offsets = [0, 0], sizes = [8, 1], strides = [1, 1]} : vector<8x56xf32> to vector<8x1xf32>
    %22 = vector.shape_cast %21 : vector<8x1xf32> to vector<8x1xf32>
    %23 = vector.broadcast %22 : vector<8x1xf32> to vector<8x256xf32>
    %24 = vector.extract_strided_slice %12 {offsets = [0, 2], sizes = [8, 1], strides = [1, 1]} : vector<8x56xf32> to vector<8x1xf32>
    %25 = vector.shape_cast %24 : vector<8x1xf32> to vector<8x1xf32>
    %26 = vector.broadcast %25 : vector<8x1xf32> to vector<8x256xf32>
    %27 = vector.extract_strided_slice %12 {offsets = [0, 3], sizes = [8, 1], strides = [1, 1]} : vector<8x56xf32> to vector<8x1xf32>
    %28 = vector.shape_cast %27 : vector<8x1xf32> to vector<8x1xf32>
    %29 = vector.broadcast %28 : vector<8x1xf32> to vector<8x256xf32>
    %30 = vector.extract_strided_slice %12 {offsets = [0, 4], sizes = [8, 1], strides = [1, 1]} : vector<8x56xf32> to vector<8x1xf32>
    %31 = vector.shape_cast %30 : vector<8x1xf32> to vector<8x1xf32>
    %32 = vector.broadcast %31 : vector<8x1xf32> to vector<8x256xf32>
    %33 = vector.extract_strided_slice %12 {offsets = [0, 5], sizes = [8, 1], strides = [1, 1]} : vector<8x56xf32> to vector<8x1xf32>
    %34 = vector.shape_cast %33 : vector<8x1xf32> to vector<8x1xf32>
    %35 = vector.broadcast %34 : vector<8x1xf32> to vector<8x256xf32>
    %36 = vector.extract_strided_slice %12 {offsets = [0, 6], sizes = [8, 1], strides = [1, 1]} : vector<8x56xf32> to vector<8x1xf32>
    %37 = vector.shape_cast %36 : vector<8x1xf32> to vector<8x1xf32>
    %38 = vector.broadcast %37 : vector<8x1xf32> to vector<8x256xf32>
    %39 = arith.subf %3, %23 : vector<8x256xf32>
    %40 = arith.subf %6, %19 : vector<8x256xf32>
    %41 = arith.mulf %39, %32 : vector<8x256xf32>
    %42 = arith.mulf %40, %35 : vector<8x256xf32>
    %43 = arith.addf %41, %42 : vector<8x256xf32>
    %cst_2 = arith.constant 0.000000e+00 : f32
    %cst_3 = arith.constant 1.000000e+00 : f32
    %44 = vector.broadcast %cst_2 : f32 to vector<8x256xf32>
    %45 = arith.maximumf %44, %43 : vector<8x256xf32>
    %46 = vector.broadcast %cst_3 : f32 to vector<8x256xf32>
    %47 = arith.minimumf %46, %45 : vector<8x256xf32>
    %48 = arith.mulf %47, %26 : vector<8x256xf32>
    %49 = arith.subf %39, %48 : vector<8x256xf32>
    %50 = arith.mulf %47, %29 : vector<8x256xf32>
    %51 = arith.subf %40, %50 : vector<8x256xf32>
    %52 = arith.mulf %49, %49 : vector<8x256xf32>
    %53 = arith.mulf %51, %51 : vector<8x256xf32>
    %54 = arith.addf %52, %53 : vector<8x256xf32>
    %55 = arith.minimumf %15, %54 : vector<8x256xf32>
    %56 = vector.extract_strided_slice %12 {offsets = [0, 8], sizes = [8, 1], strides = [1, 1]} : vector<8x56xf32> to vector<8x1xf32>
    %57 = vector.shape_cast %56 : vector<8x1xf32> to vector<8x1xf32>
    %58 = vector.broadcast %57 : vector<8x1xf32> to vector<8x256xf32>
    %59 = arith.cmpf ogt, %58, %6 : vector<8x256xf32>
    %60 = arith.xori %20, %59 : vector<8x256xi1>
    %61 = arith.mulf %40, %38 : vector<8x256xf32>
    %62 = arith.cmpf olt, %39, %61 : vector<8x256xf32>
    %63 = arith.andi %60, %62 : vector<8x256xi1>
    %64 = arith.xori %16, %63 : vector<8x256xi1>
    %65 = vector.extract_strided_slice %12 {offsets = [0, 7], sizes = [8, 1], strides = [1, 1]} : vector<8x56xf32> to vector<8x1xf32>
    %66 = vector.shape_cast %65 : vector<8x1xf32> to vector<8x1xf32>
    %67 = vector.broadcast %66 : vector<8x1xf32> to vector<8x256xf32>
    %68 = vector.extract_strided_slice %12 {offsets = [0, 9], sizes = [8, 1], strides = [1, 1]} : vector<8x56xf32> to vector<8x1xf32>
    %69 = vector.shape_cast %68 : vector<8x1xf32> to vector<8x1xf32>
    %70 = vector.broadcast %69 : vector<8x1xf32> to vector<8x256xf32>
    %71 = vector.extract_strided_slice %12 {offsets = [0, 10], sizes = [8, 1], strides = [1, 1]} : vector<8x56xf32> to vector<8x1xf32>
    %72 = vector.shape_cast %71 : vector<8x1xf32> to vector<8x1xf32>
    %73 = vector.broadcast %72 : vector<8x1xf32> to vector<8x256xf32>
    %74 = vector.extract_strided_slice %12 {offsets = [0, 11], sizes = [8, 1], strides = [1, 1]} : vector<8x56xf32> to vector<8x1xf32>
    %75 = vector.shape_cast %74 : vector<8x1xf32> to vector<8x1xf32>
    %76 = vector.broadcast %75 : vector<8x1xf32> to vector<8x256xf32>
    %77 = vector.extract_strided_slice %12 {offsets = [0, 12], sizes = [8, 1], strides = [1, 1]} : vector<8x56xf32> to vector<8x1xf32>
    %78 = vector.shape_cast %77 : vector<8x1xf32> to vector<8x1xf32>
    %79 = vector.broadcast %78 : vector<8x1xf32> to vector<8x256xf32>
    %80 = vector.extract_strided_slice %12 {offsets = [0, 13], sizes = [8, 1], strides = [1, 1]} : vector<8x56xf32> to vector<8x1xf32>
    %81 = vector.shape_cast %80 : vector<8x1xf32> to vector<8x1xf32>
    %82 = vector.broadcast %81 : vector<8x1xf32> to vector<8x256xf32>
    %83 = arith.subf %3, %67 : vector<8x256xf32>
    %84 = arith.subf %6, %58 : vector<8x256xf32>
    %85 = arith.mulf %83, %76 : vector<8x256xf32>
    %86 = arith.mulf %84, %79 : vector<8x256xf32>
    %87 = arith.addf %85, %86 : vector<8x256xf32>
    %cst_4 = arith.constant 0.000000e+00 : f32
    %cst_5 = arith.constant 1.000000e+00 : f32
    %88 = vector.broadcast %cst_4 : f32 to vector<8x256xf32>
    %89 = arith.maximumf %88, %87 : vector<8x256xf32>
    %90 = vector.broadcast %cst_5 : f32 to vector<8x256xf32>
    %91 = arith.minimumf %90, %89 : vector<8x256xf32>
    %92 = arith.mulf %91, %70 : vector<8x256xf32>
    %93 = arith.subf %83, %92 : vector<8x256xf32>
    %94 = arith.mulf %91, %73 : vector<8x256xf32>
    %95 = arith.subf %84, %94 : vector<8x256xf32>
    %96 = arith.mulf %93, %93 : vector<8x256xf32>
    %97 = arith.mulf %95, %95 : vector<8x256xf32>
    %98 = arith.addf %96, %97 : vector<8x256xf32>
    %99 = arith.minimumf %55, %98 : vector<8x256xf32>
    %100 = vector.extract_strided_slice %12 {offsets = [0, 15], sizes = [8, 1], strides = [1, 1]} : vector<8x56xf32> to vector<8x1xf32>
    %101 = vector.shape_cast %100 : vector<8x1xf32> to vector<8x1xf32>
    %102 = vector.broadcast %101 : vector<8x1xf32> to vector<8x256xf32>
    %103 = arith.cmpf ogt, %102, %6 : vector<8x256xf32>
    %104 = arith.xori %59, %103 : vector<8x256xi1>
    %105 = arith.mulf %84, %82 : vector<8x256xf32>
    %106 = arith.cmpf olt, %83, %105 : vector<8x256xf32>
    %107 = arith.andi %104, %106 : vector<8x256xi1>
    %108 = arith.xori %64, %107 : vector<8x256xi1>
    %109 = vector.extract_strided_slice %12 {offsets = [0, 14], sizes = [8, 1], strides = [1, 1]} : vector<8x56xf32> to vector<8x1xf32>
    %110 = vector.shape_cast %109 : vector<8x1xf32> to vector<8x1xf32>
    %111 = vector.broadcast %110 : vector<8x1xf32> to vector<8x256xf32>
    %112 = vector.extract_strided_slice %12 {offsets = [0, 16], sizes = [8, 1], strides = [1, 1]} : vector<8x56xf32> to vector<8x1xf32>
    %113 = vector.shape_cast %112 : vector<8x1xf32> to vector<8x1xf32>
    %114 = vector.broadcast %113 : vector<8x1xf32> to vector<8x256xf32>
    %115 = vector.extract_strided_slice %12 {offsets = [0, 17], sizes = [8, 1], strides = [1, 1]} : vector<8x56xf32> to vector<8x1xf32>
    %116 = vector.shape_cast %115 : vector<8x1xf32> to vector<8x1xf32>
    %117 = vector.broadcast %116 : vector<8x1xf32> to vector<8x256xf32>
    %118 = vector.extract_strided_slice %12 {offsets = [0, 18], sizes = [8, 1], strides = [1, 1]} : vector<8x56xf32> to vector<8x1xf32>
    %119 = vector.shape_cast %118 : vector<8x1xf32> to vector<8x1xf32>
    %120 = vector.broadcast %119 : vector<8x1xf32> to vector<8x256xf32>
    %121 = vector.extract_strided_slice %12 {offsets = [0, 19], sizes = [8, 1], strides = [1, 1]} : vector<8x56xf32> to vector<8x1xf32>
    %122 = vector.shape_cast %121 : vector<8x1xf32> to vector<8x1xf32>
    %123 = vector.broadcast %122 : vector<8x1xf32> to vector<8x256xf32>
    %124 = vector.extract_strided_slice %12 {offsets = [0, 20], sizes = [8, 1], strides = [1, 1]} : vector<8x56xf32> to vector<8x1xf32>
    %125 = vector.shape_cast %124 : vector<8x1xf32> to vector<8x1xf32>
    %126 = vector.broadcast %125 : vector<8x1xf32> to vector<8x256xf32>
    %127 = arith.subf %3, %111 : vector<8x256xf32>
    %128 = arith.subf %6, %102 : vector<8x256xf32>
    %129 = arith.mulf %127, %120 : vector<8x256xf32>
    %130 = arith.mulf %128, %123 : vector<8x256xf32>
    %131 = arith.addf %129, %130 : vector<8x256xf32>
    %cst_6 = arith.constant 0.000000e+00 : f32
    %cst_7 = arith.constant 1.000000e+00 : f32
    %132 = vector.broadcast %cst_6 : f32 to vector<8x256xf32>
    %133 = arith.maximumf %132, %131 : vector<8x256xf32>
    %134 = vector.broadcast %cst_7 : f32 to vector<8x256xf32>
    %135 = arith.minimumf %134, %133 : vector<8x256xf32>
    %136 = arith.mulf %135, %114 : vector<8x256xf32>
    %137 = arith.subf %127, %136 : vector<8x256xf32>
    %138 = arith.mulf %135, %117 : vector<8x256xf32>
    %139 = arith.subf %128, %138 : vector<8x256xf32>
    %140 = arith.mulf %137, %137 : vector<8x256xf32>
    %141 = arith.mulf %139, %139 : vector<8x256xf32>
    %142 = arith.addf %140, %141 : vector<8x256xf32>
    %143 = arith.minimumf %99, %142 : vector<8x256xf32>
    %144 = vector.extract_strided_slice %12 {offsets = [0, 22], sizes = [8, 1], strides = [1, 1]} : vector<8x56xf32> to vector<8x1xf32>
    %145 = vector.shape_cast %144 : vector<8x1xf32> to vector<8x1xf32>
    %146 = vector.broadcast %145 : vector<8x1xf32> to vector<8x256xf32>
    %147 = arith.cmpf ogt, %146, %6 : vector<8x256xf32>
    %148 = arith.xori %103, %147 : vector<8x256xi1>
    %149 = arith.mulf %128, %126 : vector<8x256xf32>
    %150 = arith.cmpf olt, %127, %149 : vector<8x256xf32>
    %151 = arith.andi %148, %150 : vector<8x256xi1>
    %152 = arith.xori %108, %151 : vector<8x256xi1>
    %153 = vector.extract_strided_slice %12 {offsets = [0, 21], sizes = [8, 1], strides = [1, 1]} : vector<8x56xf32> to vector<8x1xf32>
    %154 = vector.shape_cast %153 : vector<8x1xf32> to vector<8x1xf32>
    %155 = vector.broadcast %154 : vector<8x1xf32> to vector<8x256xf32>
    %156 = vector.extract_strided_slice %12 {offsets = [0, 23], sizes = [8, 1], strides = [1, 1]} : vector<8x56xf32> to vector<8x1xf32>
    %157 = vector.shape_cast %156 : vector<8x1xf32> to vector<8x1xf32>
    %158 = vector.broadcast %157 : vector<8x1xf32> to vector<8x256xf32>
    %159 = vector.extract_strided_slice %12 {offsets = [0, 24], sizes = [8, 1], strides = [1, 1]} : vector<8x56xf32> to vector<8x1xf32>
    %160 = vector.shape_cast %159 : vector<8x1xf32> to vector<8x1xf32>
    %161 = vector.broadcast %160 : vector<8x1xf32> to vector<8x256xf32>
    %162 = vector.extract_strided_slice %12 {offsets = [0, 25], sizes = [8, 1], strides = [1, 1]} : vector<8x56xf32> to vector<8x1xf32>
    %163 = vector.shape_cast %162 : vector<8x1xf32> to vector<8x1xf32>
    %164 = vector.broadcast %163 : vector<8x1xf32> to vector<8x256xf32>
    %165 = vector.extract_strided_slice %12 {offsets = [0, 26], sizes = [8, 1], strides = [1, 1]} : vector<8x56xf32> to vector<8x1xf32>
    %166 = vector.shape_cast %165 : vector<8x1xf32> to vector<8x1xf32>
    %167 = vector.broadcast %166 : vector<8x1xf32> to vector<8x256xf32>
    %168 = vector.extract_strided_slice %12 {offsets = [0, 27], sizes = [8, 1], strides = [1, 1]} : vector<8x56xf32> to vector<8x1xf32>
    %169 = vector.shape_cast %168 : vector<8x1xf32> to vector<8x1xf32>
    %170 = vector.broadcast %169 : vector<8x1xf32> to vector<8x256xf32>
    %171 = arith.subf %3, %155 : vector<8x256xf32>
    %172 = arith.subf %6, %146 : vector<8x256xf32>
    %173 = arith.mulf %171, %164 : vector<8x256xf32>
    %174 = arith.mulf %172, %167 : vector<8x256xf32>
    %175 = arith.addf %173, %174 : vector<8x256xf32>
    %cst_8 = arith.constant 0.000000e+00 : f32
    %cst_9 = arith.constant 1.000000e+00 : f32
    %176 = vector.broadcast %cst_8 : f32 to vector<8x256xf32>
    %177 = arith.maximumf %176, %175 : vector<8x256xf32>
    %178 = vector.broadcast %cst_9 : f32 to vector<8x256xf32>
    %179 = arith.minimumf %178, %177 : vector<8x256xf32>
    %180 = arith.mulf %179, %158 : vector<8x256xf32>
    %181 = arith.subf %171, %180 : vector<8x256xf32>
    %182 = arith.mulf %179, %161 : vector<8x256xf32>
    %183 = arith.subf %172, %182 : vector<8x256xf32>
    %184 = arith.mulf %181, %181 : vector<8x256xf32>
    %185 = arith.mulf %183, %183 : vector<8x256xf32>
    %186 = arith.addf %184, %185 : vector<8x256xf32>
    %187 = arith.minimumf %143, %186 : vector<8x256xf32>
    %188 = vector.extract_strided_slice %12 {offsets = [0, 29], sizes = [8, 1], strides = [1, 1]} : vector<8x56xf32> to vector<8x1xf32>
    %189 = vector.shape_cast %188 : vector<8x1xf32> to vector<8x1xf32>
    %190 = vector.broadcast %189 : vector<8x1xf32> to vector<8x256xf32>
    %191 = arith.cmpf ogt, %190, %6 : vector<8x256xf32>
    %192 = arith.xori %147, %191 : vector<8x256xi1>
    %193 = arith.mulf %172, %170 : vector<8x256xf32>
    %194 = arith.cmpf olt, %171, %193 : vector<8x256xf32>
    %195 = arith.andi %192, %194 : vector<8x256xi1>
    %196 = arith.xori %152, %195 : vector<8x256xi1>
    %197 = vector.extract_strided_slice %12 {offsets = [0, 28], sizes = [8, 1], strides = [1, 1]} : vector<8x56xf32> to vector<8x1xf32>
    %198 = vector.shape_cast %197 : vector<8x1xf32> to vector<8x1xf32>
    %199 = vector.broadcast %198 : vector<8x1xf32> to vector<8x256xf32>
    %200 = vector.extract_strided_slice %12 {offsets = [0, 30], sizes = [8, 1], strides = [1, 1]} : vector<8x56xf32> to vector<8x1xf32>
    %201 = vector.shape_cast %200 : vector<8x1xf32> to vector<8x1xf32>
    %202 = vector.broadcast %201 : vector<8x1xf32> to vector<8x256xf32>
    %203 = vector.extract_strided_slice %12 {offsets = [0, 31], sizes = [8, 1], strides = [1, 1]} : vector<8x56xf32> to vector<8x1xf32>
    %204 = vector.shape_cast %203 : vector<8x1xf32> to vector<8x1xf32>
    %205 = vector.broadcast %204 : vector<8x1xf32> to vector<8x256xf32>
    %206 = vector.extract_strided_slice %12 {offsets = [0, 32], sizes = [8, 1], strides = [1, 1]} : vector<8x56xf32> to vector<8x1xf32>
    %207 = vector.shape_cast %206 : vector<8x1xf32> to vector<8x1xf32>
    %208 = vector.broadcast %207 : vector<8x1xf32> to vector<8x256xf32>
    %209 = vector.extract_strided_slice %12 {offsets = [0, 33], sizes = [8, 1], strides = [1, 1]} : vector<8x56xf32> to vector<8x1xf32>
    %210 = vector.shape_cast %209 : vector<8x1xf32> to vector<8x1xf32>
    %211 = vector.broadcast %210 : vector<8x1xf32> to vector<8x256xf32>
    %212 = vector.extract_strided_slice %12 {offsets = [0, 34], sizes = [8, 1], strides = [1, 1]} : vector<8x56xf32> to vector<8x1xf32>
    %213 = vector.shape_cast %212 : vector<8x1xf32> to vector<8x1xf32>
    %214 = vector.broadcast %213 : vector<8x1xf32> to vector<8x256xf32>
    %215 = arith.subf %3, %199 : vector<8x256xf32>
    %216 = arith.subf %6, %190 : vector<8x256xf32>
    %217 = arith.mulf %215, %208 : vector<8x256xf32>
    %218 = arith.mulf %216, %211 : vector<8x256xf32>
    %219 = arith.addf %217, %218 : vector<8x256xf32>
    %cst_10 = arith.constant 0.000000e+00 : f32
    %cst_11 = arith.constant 1.000000e+00 : f32
    %220 = vector.broadcast %cst_10 : f32 to vector<8x256xf32>
    %221 = arith.maximumf %220, %219 : vector<8x256xf32>
    %222 = vector.broadcast %cst_11 : f32 to vector<8x256xf32>
    %223 = arith.minimumf %222, %221 : vector<8x256xf32>
    %224 = arith.mulf %223, %202 : vector<8x256xf32>
    %225 = arith.subf %215, %224 : vector<8x256xf32>
    %226 = arith.mulf %223, %205 : vector<8x256xf32>
    %227 = arith.subf %216, %226 : vector<8x256xf32>
    %228 = arith.mulf %225, %225 : vector<8x256xf32>
    %229 = arith.mulf %227, %227 : vector<8x256xf32>
    %230 = arith.addf %228, %229 : vector<8x256xf32>
    %231 = arith.minimumf %187, %230 : vector<8x256xf32>
    %232 = vector.extract_strided_slice %12 {offsets = [0, 36], sizes = [8, 1], strides = [1, 1]} : vector<8x56xf32> to vector<8x1xf32>
    %233 = vector.shape_cast %232 : vector<8x1xf32> to vector<8x1xf32>
    %234 = vector.broadcast %233 : vector<8x1xf32> to vector<8x256xf32>
    %235 = arith.cmpf ogt, %234, %6 : vector<8x256xf32>
    %236 = arith.xori %191, %235 : vector<8x256xi1>
    %237 = arith.mulf %216, %214 : vector<8x256xf32>
    %238 = arith.cmpf olt, %215, %237 : vector<8x256xf32>
    %239 = arith.andi %236, %238 : vector<8x256xi1>
    %240 = arith.xori %196, %239 : vector<8x256xi1>
    %241 = vector.extract_strided_slice %12 {offsets = [0, 35], sizes = [8, 1], strides = [1, 1]} : vector<8x56xf32> to vector<8x1xf32>
    %242 = vector.shape_cast %241 : vector<8x1xf32> to vector<8x1xf32>
    %243 = vector.broadcast %242 : vector<8x1xf32> to vector<8x256xf32>
    %244 = vector.extract_strided_slice %12 {offsets = [0, 37], sizes = [8, 1], strides = [1, 1]} : vector<8x56xf32> to vector<8x1xf32>
    %245 = vector.shape_cast %244 : vector<8x1xf32> to vector<8x1xf32>
    %246 = vector.broadcast %245 : vector<8x1xf32> to vector<8x256xf32>
    %247 = vector.extract_strided_slice %12 {offsets = [0, 38], sizes = [8, 1], strides = [1, 1]} : vector<8x56xf32> to vector<8x1xf32>
    %248 = vector.shape_cast %247 : vector<8x1xf32> to vector<8x1xf32>
    %249 = vector.broadcast %248 : vector<8x1xf32> to vector<8x256xf32>
    %250 = vector.extract_strided_slice %12 {offsets = [0, 39], sizes = [8, 1], strides = [1, 1]} : vector<8x56xf32> to vector<8x1xf32>
    %251 = vector.shape_cast %250 : vector<8x1xf32> to vector<8x1xf32>
    %252 = vector.broadcast %251 : vector<8x1xf32> to vector<8x256xf32>
    %253 = vector.extract_strided_slice %12 {offsets = [0, 40], sizes = [8, 1], strides = [1, 1]} : vector<8x56xf32> to vector<8x1xf32>
    %254 = vector.shape_cast %253 : vector<8x1xf32> to vector<8x1xf32>
    %255 = vector.broadcast %254 : vector<8x1xf32> to vector<8x256xf32>
    %256 = vector.extract_strided_slice %12 {offsets = [0, 41], sizes = [8, 1], strides = [1, 1]} : vector<8x56xf32> to vector<8x1xf32>
    %257 = vector.shape_cast %256 : vector<8x1xf32> to vector<8x1xf32>
    %258 = vector.broadcast %257 : vector<8x1xf32> to vector<8x256xf32>
    %259 = arith.subf %3, %243 : vector<8x256xf32>
    %260 = arith.subf %6, %234 : vector<8x256xf32>
    %261 = arith.mulf %259, %252 : vector<8x256xf32>
    %262 = arith.mulf %260, %255 : vector<8x256xf32>
    %263 = arith.addf %261, %262 : vector<8x256xf32>
    %cst_12 = arith.constant 0.000000e+00 : f32
    %cst_13 = arith.constant 1.000000e+00 : f32
    %264 = vector.broadcast %cst_12 : f32 to vector<8x256xf32>
    %265 = arith.maximumf %264, %263 : vector<8x256xf32>
    %266 = vector.broadcast %cst_13 : f32 to vector<8x256xf32>
    %267 = arith.minimumf %266, %265 : vector<8x256xf32>
    %268 = arith.mulf %267, %246 : vector<8x256xf32>
    %269 = arith.subf %259, %268 : vector<8x256xf32>
    %270 = arith.mulf %267, %249 : vector<8x256xf32>
    %271 = arith.subf %260, %270 : vector<8x256xf32>
    %272 = arith.mulf %269, %269 : vector<8x256xf32>
    %273 = arith.mulf %271, %271 : vector<8x256xf32>
    %274 = arith.addf %272, %273 : vector<8x256xf32>
    %275 = arith.minimumf %231, %274 : vector<8x256xf32>
    %276 = vector.extract_strided_slice %12 {offsets = [0, 43], sizes = [8, 1], strides = [1, 1]} : vector<8x56xf32> to vector<8x1xf32>
    %277 = vector.shape_cast %276 : vector<8x1xf32> to vector<8x1xf32>
    %278 = vector.broadcast %277 : vector<8x1xf32> to vector<8x256xf32>
    %279 = arith.cmpf ogt, %278, %6 : vector<8x256xf32>
    %280 = arith.xori %235, %279 : vector<8x256xi1>
    %281 = arith.mulf %260, %258 : vector<8x256xf32>
    %282 = arith.cmpf olt, %259, %281 : vector<8x256xf32>
    %283 = arith.andi %280, %282 : vector<8x256xi1>
    %284 = arith.xori %240, %283 : vector<8x256xi1>
    %285 = vector.extract_strided_slice %12 {offsets = [0, 42], sizes = [8, 1], strides = [1, 1]} : vector<8x56xf32> to vector<8x1xf32>
    %286 = vector.shape_cast %285 : vector<8x1xf32> to vector<8x1xf32>
    %287 = vector.broadcast %286 : vector<8x1xf32> to vector<8x256xf32>
    %288 = vector.extract_strided_slice %12 {offsets = [0, 44], sizes = [8, 1], strides = [1, 1]} : vector<8x56xf32> to vector<8x1xf32>
    %289 = vector.shape_cast %288 : vector<8x1xf32> to vector<8x1xf32>
    %290 = vector.broadcast %289 : vector<8x1xf32> to vector<8x256xf32>
    %291 = vector.extract_strided_slice %12 {offsets = [0, 45], sizes = [8, 1], strides = [1, 1]} : vector<8x56xf32> to vector<8x1xf32>
    %292 = vector.shape_cast %291 : vector<8x1xf32> to vector<8x1xf32>
    %293 = vector.broadcast %292 : vector<8x1xf32> to vector<8x256xf32>
    %294 = vector.extract_strided_slice %12 {offsets = [0, 46], sizes = [8, 1], strides = [1, 1]} : vector<8x56xf32> to vector<8x1xf32>
    %295 = vector.shape_cast %294 : vector<8x1xf32> to vector<8x1xf32>
    %296 = vector.broadcast %295 : vector<8x1xf32> to vector<8x256xf32>
    %297 = vector.extract_strided_slice %12 {offsets = [0, 47], sizes = [8, 1], strides = [1, 1]} : vector<8x56xf32> to vector<8x1xf32>
    %298 = vector.shape_cast %297 : vector<8x1xf32> to vector<8x1xf32>
    %299 = vector.broadcast %298 : vector<8x1xf32> to vector<8x256xf32>
    %300 = vector.extract_strided_slice %12 {offsets = [0, 48], sizes = [8, 1], strides = [1, 1]} : vector<8x56xf32> to vector<8x1xf32>
    %301 = vector.shape_cast %300 : vector<8x1xf32> to vector<8x1xf32>
    %302 = vector.broadcast %301 : vector<8x1xf32> to vector<8x256xf32>
    %303 = arith.subf %3, %287 : vector<8x256xf32>
    %304 = arith.subf %6, %278 : vector<8x256xf32>
    %305 = arith.mulf %303, %296 : vector<8x256xf32>
    %306 = arith.mulf %304, %299 : vector<8x256xf32>
    %307 = arith.addf %305, %306 : vector<8x256xf32>
    %cst_14 = arith.constant 0.000000e+00 : f32
    %cst_15 = arith.constant 1.000000e+00 : f32
    %308 = vector.broadcast %cst_14 : f32 to vector<8x256xf32>
    %309 = arith.maximumf %308, %307 : vector<8x256xf32>
    %310 = vector.broadcast %cst_15 : f32 to vector<8x256xf32>
    %311 = arith.minimumf %310, %309 : vector<8x256xf32>
    %312 = arith.mulf %311, %290 : vector<8x256xf32>
    %313 = arith.subf %303, %312 : vector<8x256xf32>
    %314 = arith.mulf %311, %293 : vector<8x256xf32>
    %315 = arith.subf %304, %314 : vector<8x256xf32>
    %316 = arith.mulf %313, %313 : vector<8x256xf32>
    %317 = arith.mulf %315, %315 : vector<8x256xf32>
    %318 = arith.addf %316, %317 : vector<8x256xf32>
    %319 = arith.minimumf %275, %318 : vector<8x256xf32>
    %320 = vector.extract_strided_slice %12 {offsets = [0, 50], sizes = [8, 1], strides = [1, 1]} : vector<8x56xf32> to vector<8x1xf32>
    %321 = vector.shape_cast %320 : vector<8x1xf32> to vector<8x1xf32>
    %322 = vector.broadcast %321 : vector<8x1xf32> to vector<8x256xf32>
    %323 = arith.cmpf ogt, %322, %6 : vector<8x256xf32>
    %324 = arith.xori %279, %323 : vector<8x256xi1>
    %325 = arith.mulf %304, %302 : vector<8x256xf32>
    %326 = arith.cmpf olt, %303, %325 : vector<8x256xf32>
    %327 = arith.andi %324, %326 : vector<8x256xi1>
    %328 = arith.xori %284, %327 : vector<8x256xi1>
    %329 = vector.extract_strided_slice %12 {offsets = [0, 49], sizes = [8, 1], strides = [1, 1]} : vector<8x56xf32> to vector<8x1xf32>
    %330 = vector.shape_cast %329 : vector<8x1xf32> to vector<8x1xf32>
    %331 = vector.broadcast %330 : vector<8x1xf32> to vector<8x256xf32>
    %332 = vector.extract_strided_slice %12 {offsets = [0, 51], sizes = [8, 1], strides = [1, 1]} : vector<8x56xf32> to vector<8x1xf32>
    %333 = vector.shape_cast %332 : vector<8x1xf32> to vector<8x1xf32>
    %334 = vector.broadcast %333 : vector<8x1xf32> to vector<8x256xf32>
    %335 = vector.extract_strided_slice %12 {offsets = [0, 52], sizes = [8, 1], strides = [1, 1]} : vector<8x56xf32> to vector<8x1xf32>
    %336 = vector.shape_cast %335 : vector<8x1xf32> to vector<8x1xf32>
    %337 = vector.broadcast %336 : vector<8x1xf32> to vector<8x256xf32>
    %338 = vector.extract_strided_slice %12 {offsets = [0, 53], sizes = [8, 1], strides = [1, 1]} : vector<8x56xf32> to vector<8x1xf32>
    %339 = vector.shape_cast %338 : vector<8x1xf32> to vector<8x1xf32>
    %340 = vector.broadcast %339 : vector<8x1xf32> to vector<8x256xf32>
    %341 = vector.extract_strided_slice %12 {offsets = [0, 54], sizes = [8, 1], strides = [1, 1]} : vector<8x56xf32> to vector<8x1xf32>
    %342 = vector.shape_cast %341 : vector<8x1xf32> to vector<8x1xf32>
    %343 = vector.broadcast %342 : vector<8x1xf32> to vector<8x256xf32>
    %344 = vector.extract_strided_slice %12 {offsets = [0, 55], sizes = [8, 1], strides = [1, 1]} : vector<8x56xf32> to vector<8x1xf32>
    %345 = vector.shape_cast %344 : vector<8x1xf32> to vector<8x1xf32>
    %346 = vector.broadcast %345 : vector<8x1xf32> to vector<8x256xf32>
    %347 = arith.subf %3, %331 : vector<8x256xf32>
    %348 = arith.subf %6, %322 : vector<8x256xf32>
    %349 = arith.mulf %347, %340 : vector<8x256xf32>
    %350 = arith.mulf %348, %343 : vector<8x256xf32>
    %351 = arith.addf %349, %350 : vector<8x256xf32>
    %cst_16 = arith.constant 0.000000e+00 : f32
    %cst_17 = arith.constant 1.000000e+00 : f32
    %352 = vector.broadcast %cst_16 : f32 to vector<8x256xf32>
    %353 = arith.maximumf %352, %351 : vector<8x256xf32>
    %354 = vector.broadcast %cst_17 : f32 to vector<8x256xf32>
    %355 = arith.minimumf %354, %353 : vector<8x256xf32>
    %356 = arith.mulf %355, %334 : vector<8x256xf32>
    %357 = arith.subf %347, %356 : vector<8x256xf32>
    %358 = arith.mulf %355, %337 : vector<8x256xf32>
    %359 = arith.subf %348, %358 : vector<8x256xf32>
    %360 = arith.mulf %357, %357 : vector<8x256xf32>
    %361 = arith.mulf %359, %359 : vector<8x256xf32>
    %362 = arith.addf %360, %361 : vector<8x256xf32>
    %363 = arith.minimumf %319, %362 : vector<8x256xf32>
    %364 = arith.xori %323, %20 : vector<8x256xi1>
    %365 = arith.mulf %348, %346 : vector<8x256xf32>
    %366 = arith.cmpf olt, %347, %365 : vector<8x256xf32>
    %367 = arith.andi %364, %366 : vector<8x256xi1>
    %368 = arith.xori %328, %367 : vector<8x256xi1>
    %cst_18 = arith.constant 5.000000e-02 : f32
    %cst_19 = arith.constant -5.000000e-02 : f32
    %369 = vector.broadcast %cst_18 : f32 to vector<8x256xf32>
    %370 = vector.broadcast %cst_19 : f32 to vector<8x256xf32>
    %371 = arith.select %368, %369, %370 : vector<8x256xi1>, vector<8x256xf32>
    %372 = arith.mulf %371, %363 : vector<8x256xf32>
    %373 = math.tanh %372 : vector<8x256xf32>
    %cst_20 = arith.constant 5.000000e-01 : f32
    %374 = vector.broadcast %cst_20 : f32 to vector<8x256xf32>
    %375 = arith.mulf %374, %373 : vector<8x256xf32>
    %cst_21 = arith.constant 5.000000e-01 : f32
    %376 = vector.broadcast %cst_21 : f32 to vector<8x256xf32>
    %377 = arith.addf %375, %376 : vector<8x256xf32>
    %cst_22 = arith.constant 9.99999974E-6 : f32
    %cst_23 = arith.constant 0.999989986 : f32
    %378 = vector.broadcast %cst_22 : f32 to vector<8x256xf32>
    %379 = arith.maximumf %378, %377 : vector<8x256xf32>
    %380 = vector.broadcast %cst_23 : f32 to vector<8x256xf32>
    %381 = arith.minimumf %380, %379 : vector<8x256xf32>
    %382 = arith.index_cast %10 : i32 to index
    %c0_24 = arith.constant 0 : index
    %383 = vector.load %arg3[%382, %c0_24] : memref<8x256xf32, #tpu.memory_space<vmem>>, vector<8x256xf32>
    tpu.vector_store %arg3[%382, %c0_24], %381 {strides = array<i32>} : memref<8x256xf32, #tpu.memory_space<vmem>>, vector<8x256xf32>,
    %384 = arith.mulf %381, %14 : vector<8x256xf32>
    %385 = arith.addf %8, %384 : vector<8x256xf32>
    %c8_i32_25 = arith.constant 8 : i32
    %386 = arith.muli %arg0, %c8_i32_25 : i32
    %387 = arith.addi %386, %10 : i32
    %388 = vector.broadcast %387 : i32 to vector<8x1xi32>
    %389 = arith.addi %388, %7 : vector<8x1xi32>
    %c2_i32 = arith.constant 2 : i32
    %390 = vector.broadcast %c2_i32 : i32 to vector<8x1xi32>
    %391 = arith.cmpi slt, %389, %390 : vector<8x1xi32>
    %392 = arith.extui %391 : vector<8x1xi1> to vector<8x1xi32>
    %393 = arith.sitofp %392 : vector<8x1xi32> to vector<8x1xf32>
    %394 = vector.shape_cast %393 : vector<8x1xf32> to vector<8x1xf32>
    %395 = vector.broadcast %394 : vector<8x1xf32> to vector<8x256xf32>
    %396 = arith.mulf %381, %395 : vector<8x256xf32>
    %397 = arith.addf %8, %396 : vector<8x256xf32>
    %c1_i32 = arith.constant 1 : i32
    %398 = vector.extract_strided_slice %385 {offsets = [0, 0], sizes = [8, 128], strides = [1, 1]} : vector<8x256xf32> to vector<8x128xf32>
    %399 = vector.extract_strided_slice %385 {offsets = [0, 128], sizes = [8, 128], strides = [1, 1]} : vector<8x256xf32> to vector<8x128xf32>
    %400 = arith.addf %398, %399 : vector<8x128xf32>
    %c0_26 = arith.constant 0 : index
    %c0_27 = arith.constant 0 : index
    %c0_28 = arith.constant 0 : index
    %401 = vector.load %arg4[%c0_26, %c0_27, %c0_28] : memref<1x16x128xf32, #tpu.memory_space<vmem>>, vector<1x8x128xf32>
    %402 = vector.shape_cast %401 : vector<1x8x128xf32> to vector<8x128xf32>
    %403 = vector.shape_cast %400 : vector<8x128xf32> to vector<1x8x128xf32>
    tpu.vector_store %arg4[%c0_26, %c0_27, %c0_28], %403 {strides = array<i32>} : memref<1x16x128xf32, #tpu.memory_space<vmem>>, vector<1x8x128xf32>,
    %404 = vector.extract_strided_slice %397 {offsets = [0, 0], sizes = [8, 128], strides = [1, 1]} : vector<8x256xf32> to vector<8x128xf32>
    %405 = vector.extract_strided_slice %397 {offsets = [0, 128], sizes = [8, 128], strides = [1, 1]} : vector<8x256xf32> to vector<8x128xf32>
    %406 = arith.addf %404, %405 : vector<8x128xf32>
    %c0_29 = arith.constant 0 : index
    %c8 = arith.constant 8 : index
    %c0_30 = arith.constant 0 : index
    %407 = vector.load %arg4[%c0_29, %c8, %c0_30] : memref<1x16x128xf32, #tpu.memory_space<vmem>>, vector<1x8x128xf32>
    %408 = vector.shape_cast %407 : vector<1x8x128xf32> to vector<8x128xf32>
    %409 = vector.shape_cast %406 : vector<8x128xf32> to vector<1x8x128xf32>
    tpu.vector_store %arg4[%c0_29, %c8, %c0_30], %409 {strides = array<i32>} : memref<1x16x128xf32, #tpu.memory_space<vmem>>, vector<1x8x128xf32>,
    return
  }
  func.func @transform_0(%arg0: i32) -> (i32, i32) {
    %c0_i32 = arith.constant 0 : i32
    %c0_i32_0 = arith.constant 0 : i32
    return %arg0, %c0_i32 : i32, i32
  }
  func.func @transform_1(%arg0: i32) -> (i32, i32) {
    %c0_i32 = arith.constant 0 : i32
    %c0_i32_0 = arith.constant 0 : i32
    return %arg0, %c0_i32 : i32, i32
  }
  func.func @transform_2(%arg0: i32) -> (i32, i32) {
    %c0_i32 = arith.constant 0 : i32
    %c0_i32_0 = arith.constant 0 : i32
    return %arg0, %c0_i32 : i32, i32
  }
  func.func @transform_3(%arg0: i32) -> (i32, i32, i32) {
    %c0_i32 = arith.constant 0 : i32
    %c0_i32_0 = arith.constant 0 : i32
    %c0_i32_1 = arith.constant 0 : i32
    return %arg0, %c0_i32, %c0_i32_0 : i32, i32, i32
  }
}

</mosaic_0001>

<llo_original>
// kernel: tpu_custom_call.1
$region0: #{tpu_custom_call.1}
  #allocation0 [shape = 'u32[]', space=smem, size = 0x4, offset = 0x4, fixed_abs, tag = 'smem constant byte address 0x4 - core index']
  #allocation1 [shape = 'u32[72,128]{1,0:T(1,128)}', space=vmem, size = 0x9000, scoped, tag = 'internal scratch']
  %s0 = inlined_call_operand.hbm [shape: f32[8,56], index: 0, kind: input, shape index: {}]
  %s1 = inlined_call_operand.hbm [shape: f32[8,256], index: 1, kind: input, shape index: {}]
  %s2 = inlined_call_operand.hbm [shape: f32[8,256], index: 2, kind: output, shape index: {0}]
  %s3 = inlined_call_operand.hbm [shape: f32[1,16,128], index: 3, kind: output, shape index: {1}]
  %4 = xla_tuple %s2, %s3
  %s5 = sld [smem:[#allocation0]]
  $region34: #{tpu_custom_call.1} parent=0
    _
  %s7 = ssub.s32 1, %s5
  %s8 = scalar_select 0, %s7, %s5
  $region1: #{tpu_custom_call.1} parent=0
    #allocation2 [shape = 'u8[4096]{0}', space=vmem, size = 0x1000, scoped, tag = 'input window, operand 0, single buffered']
    #allocation3 [shape = 's32[1]{0}', space=sflag, size = 0x4, scoped, tag = 'scoped memory for tpu_custom_call.1']
    #allocation4 [shape = 's32[1]{0}', space=sflag, size = 0x4, scoped, tag = 'scoped memory for tpu_custom_call.1']
    #allocation5 [shape = 'u8[8192]{0}', space=vmem, size = 0x2000, scoped, tag = 'input window, operand 1, single buffered']
    #allocation6 [shape = 's32[1]{0}', space=sflag, size = 0x4, scoped, tag = 'scoped memory for tpu_custom_call.1']
    #allocation7 [shape = 'u8[8192]{0}', space=vmem, size = 0x2000, scoped, tag = 'output window, operand 0, single buffered']
    #allocation8 [shape = 'u8[8192]{0}', space=vmem, size = 0x2000, scoped, tag = 'output window, operand 1, single buffered']
    #allocation9 [shape = 's32[1]{0}', space=sflag, size = 0x4, scoped, tag = 'scoped memory for tpu_custom_call.1']
    %9 = vsyncpa [#allocation3], 0
    %10 = vsyncpa [#allocation6], 0
    %11 = vsyncpa [#allocation4], 0
    %12 = vsyncpa [#allocation9], 0
    // Predicated region
    $region2: #{tpu_custom_call.1} parent=1 // pred_check
      _
    $region3: #{tpu_custom_call.1} parent=1 // pred_check_branch
      %14 = sbr.rel (0) target = $region5
    $region4: #{tpu_custom_call.1} parent=1 // pred_region
      %16 = vsyncadd [#allocation3], 0
      %s18 = sshll.u32 %s0, 4
      %s19 = int_to_ptr.hbm [resolvable:$true] %s18
      %s20 = sshll.u32 [#allocation2], 4
      %s21 = int_to_ptr.vmem [resolvable:$true] %s20
      %23 = dma.hbm_to_vmem [thread:$0]  %s19, 128, %s21, [#allocation3]
    $region5: #{tpu_custom_call.1} parent=1 // pred_fallthru
      _
    // Predicated region
    $region6: #{tpu_custom_call.1} parent=1 // pred_check
      _
    $region7: #{tpu_custom_call.1} parent=1 // pred_check_branch
      %25 = sbr.rel (0) target = $region9
    $region8: #{tpu_custom_call.1} parent=1 // pred_region
      %27 = vsyncadd [#allocation6], 0
      %s29 = sshll.u32 %s1, 4
      %s30 = int_to_ptr.hbm [resolvable:$true] %s29
      %s31 = sshll.u32 [#allocation5], 4
      %s32 = int_to_ptr.vmem [resolvable:$true] %s31
      %34 = dma.hbm_to_vmem [thread:$0]  %s30, 256, %s32, [#allocation6]
    $region9: #{tpu_custom_call.1} parent=1 // pred_fallthru
      _
    // Predicated region
    $region10: #{tpu_custom_call.1} parent=1 // pred_check
      _
    $region11: #{tpu_custom_call.1} parent=1 // pred_check_branch
      %36 = sbr.rel (0) target = $region13
    $region12: #{tpu_custom_call.1} parent=1 // pred_region
      %38 = dma.done [#allocation3], 128
    $region13: #{tpu_custom_call.1} parent=1 // pred_fallthru
      _
    // Predicated region
    $region14: #{tpu_custom_call.1} parent=1 // pred_check
      _
    $region15: #{tpu_custom_call.1} parent=1 // pred_check_branch
      %40 = sbr.rel (0) target = $region17
    $region16: #{tpu_custom_call.1} parent=1 // pred_region
      %42 = dma.done [#allocation6], 256
    $region17: #{tpu_custom_call.1} parent=1 // pred_fallthru
      _
    %v43 = vlaneseq
    %v44 = vand.u32 %v43, 127
    %v45 = vadd.s32 %v44, 128
    %v46 = vand.u32 %v44, 15
    %v47 = vand.u32 %v45, 15
    %v48 = vcvt.s32.f32 %v46
    %v49 = vcvt.s32.f32 %v47
    %v50 = vshra.s32 %v44, 4
    %v51 = vshra.s32 %v45, 4
    %v52 = vcvt.s32.f32 %v50
    %v53 = vcvt.s32.f32 %v51
    %v54 = vlaneseq
    %v55 = vshrl.u32 %v54, 7
    %v56 = vld [vmem:[#allocation2] sm:$0xff]
    %s57 = smul.u32 0, 2
    %s58 = smul.addr %s57, 8
    %s59 = scalar_lea.vmem [#allocation5], %s58
    %v60 = vld [vmem:[%s59] sm:$0xff]
    %v61 = vld [vmem:[%s59 + $0x8] sm:$0xff]
    %63 = vset.pattern.permute.xlu0 1
    %64 = vperm.xlu0 %63, %v56
    %v65 = vpop.permute.xlu0 %64
    %vm67 = vcmp.gt.f32.partialorder %v65, %v52
    %vm68 = vcmp.gt.f32.partialorder %v65, %v53
    %69 = vset.pattern.permute.xlu0 0
    %70 = vperm.xlu0 %69, %v56
    %v71 = vpop.permute.xlu0 %70
    %73 = vset.pattern.permute.xlu0 2
    %74 = vperm.xlu0 %73, %v56
    %v75 = vpop.permute.xlu0 %74
    %77 = vset.pattern.permute.xlu0 3
    %78 = vperm.xlu0 %77, %v56
    %v79 = vpop.permute.xlu0 %78
    %81 = vset.pattern.permute.xlu0 4
    %82 = vperm.xlu0 %81, %v56
    %v83 = vpop.permute.xlu0 %82
    %85 = vset.pattern.permute.xlu0 5
    %86 = vperm.xlu0 %85, %v56
    %v87 = vpop.permute.xlu0 %86
    %89 = vset.pattern.permute.xlu0 6
    %90 = vperm.xlu0 %89, %v56
    %v91 = vpop.permute.xlu0 %90
    %v93 = vsub.f32 %v48, %v71
    %v94 = vsub.f32 %v49, %v71
    %v95 = vsub.f32 %v52, %v65
    %v96 = vsub.f32 %v53, %v65
    %v97 = vmul.f32 %v93, %v83
    %v98 = vmul.f32 %v94, %v83
    %v99 = vmul.f32 %v95, %v87
    %v100 = vmul.f32 %v96, %v87
    %v101 = vadd.f32 %v97, %v99
    %v102 = vadd.f32 %v98, %v100
    %v103 = vmax.f32 %v101, 0.0
    %v104 = vmax.f32 %v102, 0.0
    %v105 = vmin.f32 %v103, 1.0
    %v106 = vmin.f32 %v104, 1.0
    %v107 = vmul.f32 %v105, %v75
    %v108 = vmul.f32 %v106, %v75
    %v109 = vsub.f32 %v93, %v107
    %v110 = vsub.f32 %v94, %v108
    %v111 = vmul.f32 %v105, %v79
    %v112 = vmul.f32 %v106, %v79
    %v113 = vsub.f32 %v95, %v111
    %v114 = vsub.f32 %v96, %v112
    %v115 = vmul.f32 %v109, %v109
    %v116 = vmul.f32 %v110, %v110
    %v117 = vmul.f32 %v113, %v113
    %v118 = vmul.f32 %v114, %v114
    %v119 = vadd.f32 %v115, %v117
    %v120 = vadd.f32 %v116, %v118
    %v121 = vmin.f32 %v119, 1e+30
    %v122 = vmin.f32 %v120, 1e+30
    %123 = vset.pattern.permute.xlu0 8
    %124 = vperm.xlu0 %123, %v56
    %v125 = vpop.permute.xlu0 %124
    %vm127 = vcmp.gt.f32.partialorder %v125, %v52
    %vm128 = vcmp.gt.f32.partialorder %v125, %v53
    %vm129 = vmxor %vm67, %vm127
    %vm130 = vmxor %vm68, %vm128
    %v131 = vmul.f32 %v95, %v91
    %v132 = vmul.f32 %v96, %v91
    %vm133 = vcmp.lt.f32.partialorder %v93, %v131
    %vm134 = vcmp.lt.f32.partialorder %v94, %v132
    %vm135 = vmand %vm129, %vm133
    %vm136 = vmand %vm130, %vm134
    %137 = vset.pattern.permute.xlu0 7
    %138 = vperm.xlu0 %137, %v56
    %v139 = vpop.permute.xlu0 %138
    %141 = vset.pattern.permute.xlu0 9
    %142 = vperm.xlu0 %141, %v56
    %v143 = vpop.permute.xlu0 %142
    %145 = vset.pattern.permute.xlu0 10
    %146 = vperm.xlu0 %145, %v56
    %v147 = vpop.permute.xlu0 %146
    %149 = vset.pattern.permute.xlu0 11
    %150 = vperm.xlu0 %149, %v56
    %v151 = vpop.permute.xlu0 %150
    %153 = vset.pattern.permute.xlu0 12
    %154 = vperm.xlu0 %153, %v56
    %v155 = vpop.permute.xlu0 %154
    %157 = vset.pattern.permute.xlu0 13
    %158 = vperm.xlu0 %157, %v56
    %v159 = vpop.permute.xlu0 %158
    %v161 = vsub.f32 %v48, %v139
    %v162 = vsub.f32 %v49, %v139
    %v163 = vsub.f32 %v52, %v125
    %v164 = vsub.f32 %v53, %v125
    %v165 = vmul.f32 %v161, %v151
    %v166 = vmul.f32 %v162, %v151
    %v167 = vmul.f32 %v163, %v155
    %v168 = vmul.f32 %v164, %v155
    %v169 = vadd.f32 %v165, %v167
    %v170 = vadd.f32 %v166, %v168
    %v171 = vmax.f32 %v169, 0.0
    %v172 = vmax.f32 %v170, 0.0
    %v173 = vmin.f32 %v171, 1.0
    %v174 = vmin.f32 %v172, 1.0
    %v175 = vmul.f32 %v173, %v143
    %v176 = vmul.f32 %v174, %v143
    %v177 = vsub.f32 %v161, %v175
    %v178 = vsub.f32 %v162, %v176
    %v179 = vmul.f32 %v173, %v147
    %v180 = vmul.f32 %v174, %v147
    %v181 = vsub.f32 %v163, %v179
    %v182 = vsub.f32 %v164, %v180
    %v183 = vmul.f32 %v177, %v177
    %v184 = vmul.f32 %v178, %v178
    %v185 = vmul.f32 %v181, %v181
    %v186 = vmul.f32 %v182, %v182
    %v187 = vadd.f32 %v183, %v185
    %v188 = vadd.f32 %v184, %v186
    %v189 = vmin.f32 %v121, %v187
    %v190 = vmin.f32 %v122, %v188
    %191 = vset.pattern.permute.xlu0 15
    %192 = vperm.xlu0 %191, %v56
    %v193 = vpop.permute.xlu0 %192
    %vm195 = vcmp.gt.f32.partialorder %v193, %v52
    %vm196 = vcmp.gt.f32.partialorder %v193, %v53
    %vm197 = vmxor %vm127, %vm195
    %vm198 = vmxor %vm128, %vm196
    %v199 = vmul.f32 %v163, %v159
    %v200 = vmul.f32 %v164, %v159
    %vm201 = vcmp.lt.f32.partialorder %v161, %v199
    %vm202 = vcmp.lt.f32.partialorder %v162, %v200
    %vm203 = vmand %vm197, %vm201
    %vm204 = vmand %vm198, %vm202
    %vm205 = vmxor %vm135, %vm203
    %vm206 = vmxor %vm136, %vm204
    %207 = vset.pattern.permute.xlu0 14
    %208 = vperm.xlu0 %207, %v56
    %v209 = vpop.permute.xlu0 %208
    %211 = vset.pattern.permute.xlu0 16
    %212 = vperm.xlu0 %211, %v56
    %v213 = vpop.permute.xlu0 %212
    %215 = vset.pattern.permute.xlu0 17
    %216 = vperm.xlu0 %215, %v56
    %v217 = vpop.permute.xlu0 %216
    %219 = vset.pattern.permute.xlu0 18
    %220 = vperm.xlu0 %219, %v56
    %v221 = vpop.permute.xlu0 %220
    %223 = vset.pattern.permute.xlu0 19
    %224 = vperm.xlu0 %223, %v56
    %v225 = vpop.permute.xlu0 %224
    %227 = vset.pattern.permute.xlu0 20
    %228 = vperm.xlu0 %227, %v56
    %v229 = vpop.permute.xlu0 %228
    %v231 = vsub.f32 %v48, %v209
    %v232 = vsub.f32 %v49, %v209
    %v233 = vsub.f32 %v52, %v193
    %v234 = vsub.f32 %v53, %v193
    %v235 = vmul.f32 %v231, %v221
    %v236 = vmul.f32 %v232, %v221
    %v237 = vmul.f32 %v233, %v225
    %v238 = vmul.f32 %v234, %v225
    %v239 = vadd.f32 %v235, %v237
    %v240 = vadd.f32 %v236, %v238
    %v241 = vmax.f32 %v239, 0.0
    %v242 = vmax.f32 %v240, 0.0
    %v243 = vmin.f32 %v241, 1.0
    %v244 = vmin.f32 %v242, 1.0
    %v245 = vmul.f32 %v243, %v213
    %v246 = vmul.f32 %v244, %v213
    %v247 = vsub.f32 %v231, %v245
    %v248 = vsub.f32 %v232, %v246
    %v249 = vmul.f32 %v243, %v217
    %v250 = vmul.f32 %v244, %v217
    %v251 = vsub.f32 %v233, %v249
    %v252 = vsub.f32 %v234, %v250
    %v253 = vmul.f32 %v247, %v247
    %v254 = vmul.f32 %v248, %v248
    %v255 = vmul.f32 %v251, %v251
    %v256 = vmul.f32 %v252, %v252
    %v257 = vadd.f32 %v253, %v255
    %v258 = vadd.f32 %v254, %v256
    %v259 = vmin.f32 %v189, %v257
    %v260 = vmin.f32 %v190, %v258
    %261 = vset.pattern.permute.xlu0 22
    %262 = vperm.xlu0 %261, %v56
    %v263 = vpop.permute.xlu0 %262
    %vm265 = vcmp.gt.f32.partialorder %v263, %v52
    %vm266 = vcmp.gt.f32.partialorder %v263, %v53
    %vm267 = vmxor %vm195, %vm265
    %vm268 = vmxor %vm196, %vm266
    %v269 = vmul.f32 %v233, %v229
    %v270 = vmul.f32 %v234, %v229
    %vm271 = vcmp.lt.f32.partialorder %v231, %v269
    %vm272 = vcmp.lt.f32.partialorder %v232, %v270
    %vm273 = vmand %vm267, %vm271
    %vm274 = vmand %vm268, %vm272
    %vm275 = vmxor %vm205, %vm273
    %vm276 = vmxor %vm206, %vm274
    %277 = vset.pattern.permute.xlu0 21
    %278 = vperm.xlu0 %277, %v56
    %v279 = vpop.permute.xlu0 %278
    %281 = vset.pattern.permute.xlu0 23
    %282 = vperm.xlu0 %281, %v56
    %v283 = vpop.permute.xlu0 %282
    %285 = vset.pattern.permute.xlu0 24
    %286 = vperm.xlu0 %285, %v56
    %v287 = vpop.permute.xlu0 %286
    %289 = vset.pattern.permute.xlu0 25
    %290 = vperm.xlu0 %289, %v56
    %v291 = vpop.permute.xlu0 %290
    %293 = vset.pattern.permute.xlu0 26
    %294 = vperm.xlu0 %293, %v56
    %v295 = vpop.permute.xlu0 %294
    %297 = vset.pattern.permute.xlu0 27
    %298 = vperm.xlu0 %297, %v56
    %v299 = vpop.permute.xlu0 %298
    %v301 = vsub.f32 %v48, %v279
    %v302 = vsub.f32 %v49, %v279
    %v303 = vsub.f32 %v52, %v263
    %v304 = vsub.f32 %v53, %v263
    %v305 = vmul.f32 %v301, %v291
    %v306 = vmul.f32 %v302, %v291
    %v307 = vmul.f32 %v303, %v295
    %v308 = vmul.f32 %v304, %v295
    %v309 = vadd.f32 %v305, %v307
    %v310 = vadd.f32 %v306, %v308
    %v311 = vmax.f32 %v309, 0.0
    %v312 = vmax.f32 %v310, 0.0
    %v313 = vmin.f32 %v311, 1.0
    %v314 = vmin.f32 %v312, 1.0
    %v315 = vmul.f32 %v313, %v283
    %v316 = vmul.f32 %v314, %v283
    %v317 = vsub.f32 %v301, %v315
    %v318 = vsub.f32 %v302, %v316
    %v319 = vmul.f32 %v313, %v287
    %v320 = vmul.f32 %v314, %v287
    %v321 = vsub.f32 %v303, %v319
    %v322 = vsub.f32 %v304, %v320
    %v323 = vmul.f32 %v317, %v317
    %v324 = vmul.f32 %v318, %v318
    %v325 = vmul.f32 %v321, %v321
    %v326 = vmul.f32 %v322, %v322
    %v327 = vadd.f32 %v323, %v325
    %v328 = vadd.f32 %v324, %v326
    %v329 = vmin.f32 %v259, %v327
    %v330 = vmin.f32 %v260, %v328
    %331 = vset.pattern.permute.xlu0 29
    %332 = vperm.xlu0 %331, %v56
    %v333 = vpop.permute.xlu0 %332
    %vm335 = vcmp.gt.f32.partialorder %v333, %v52
    %vm336 = vcmp.gt.f32.partialorder %v333, %v53
    %vm337 = vmxor %vm265, %vm335
    %vm338 = vmxor %vm266, %vm336
    %v339 = vmul.f32 %v303, %v299
    %v340 = vmul.f32 %v304, %v299
    %vm341 = vcmp.lt.f32.partialorder %v301, %v339
    %vm342 = vcmp.lt.f32.partialorder %v302, %v340
    %vm343 = vmand %vm337, %vm341
    %vm344 = vmand %vm338, %vm342
    %vm345 = vmxor %vm275, %vm343
    %vm346 = vmxor %vm276, %vm344
    %347 = vset.pattern.permute.xlu0 28
    %348 = vperm.xlu0 %347, %v56
    %v349 = vpop.permute.xlu0 %348
    %351 = vset.pattern.permute.xlu0 30
    %352 = vperm.xlu0 %351, %v56
    %v353 = vpop.permute.xlu0 %352
    %355 = vset.pattern.permute.xlu0 31
    %356 = vperm.xlu0 %355, %v56
    %v357 = vpop.permute.xlu0 %356
    %359 = vset.pattern.permute.xlu0 32
    %360 = vperm.xlu0 %359, %v56
    %v361 = vpop.permute.xlu0 %360
    %363 = vset.pattern.permute.xlu0 33
    %364 = vperm.xlu0 %363, %v56
    %v365 = vpop.permute.xlu0 %364
    %367 = vset.pattern.permute.xlu0 34
    %368 = vperm.xlu0 %367, %v56
    %v369 = vpop.permute.xlu0 %368
    %v371 = vsub.f32 %v48, %v349
    %v372 = vsub.f32 %v49, %v349
    %v373 = vsub.f32 %v52, %v333
    %v374 = vsub.f32 %v53, %v333
    %v375 = vmul.f32 %v371, %v361
    %v376 = vmul.f32 %v372, %v361
    %v377 = vmul.f32 %v373, %v365
    %v378 = vmul.f32 %v374, %v365
    %v379 = vadd.f32 %v375, %v377
    %v380 = vadd.f32 %v376, %v378
    %v381 = vmax.f32 %v379, 0.0
    %v382 = vmax.f32 %v380, 0.0
    %v383 = vmin.f32 %v381, 1.0
    %v384 = vmin.f32 %v382, 1.0
    %v385 = vmul.f32 %v383, %v353
    %v386 = vmul.f32 %v384, %v353
    %v387 = vsub.f32 %v371, %v385
    %v388 = vsub.f32 %v372, %v386
    %v389 = vmul.f32 %v383, %v357
    %v390 = vmul.f32 %v384, %v357
    %v391 = vsub.f32 %v373, %v389
    %v392 = vsub.f32 %v374, %v390
    %v393 = vmul.f32 %v387, %v387
    %v394 = vmul.f32 %v388, %v388
    %v395 = vmul.f32 %v391, %v391
    %v396 = vmul.f32 %v392, %v392
    %v397 = vadd.f32 %v393, %v395
    %v398 = vadd.f32 %v394, %v396
    %v399 = vmin.f32 %v329, %v397
    %v400 = vmin.f32 %v330, %v398
    %401 = vset.pattern.permute.xlu0 36
    %402 = vperm.xlu0 %401, %v56
    %v403 = vpop.permute.xlu0 %402
    %vm405 = vcmp.gt.f32.partialorder %v403, %v52
    %vm406 = vcmp.gt.f32.partialorder %v403, %v53
    %vm407 = vmxor %vm335, %vm405
    %vm408 = vmxor %vm336, %vm406
    %v409 = vmul.f32 %v373, %v369
    %v410 = vmul.f32 %v374, %v369
    %vm411 = vcmp.lt.f32.partialorder %v371, %v409
    %vm412 = vcmp.lt.f32.partialorder %v372, %v410
    %vm413 = vmand %vm407, %vm411
    %vm414 = vmand %vm408, %vm412
    %vm415 = vmxor %vm345, %vm413
    %vm416 = vmxor %vm346, %vm414
    %417 = vset.pattern.permute.xlu0 35
    %418 = vperm.xlu0 %417, %v56
    %v419 = vpop.permute.xlu0 %418
    %421 = vset.pattern.permute.xlu0 37
    %422 = vperm.xlu0 %421, %v56
    %v423 = vpop.permute.xlu0 %422
    %425 = vset.pattern.permute.xlu0 38
    %426 = vperm.xlu0 %425, %v56
    %v427 = vpop.permute.xlu0 %426
    %429 = vset.pattern.permute.xlu0 39
    %430 = vperm.xlu0 %429, %v56
    %v431 = vpop.permute.xlu0 %430
    %433 = vset.pattern.permute.xlu0 40
    %434 = vperm.xlu0 %433, %v56
    %v435 = vpop.permute.xlu0 %434
    %437 = vset.pattern.permute.xlu0 41
    %438 = vperm.xlu0 %437, %v56
    %v439 = vpop.permute.xlu0 %438
    %v441 = vsub.f32 %v48, %v419
    %v442 = vsub.f32 %v49, %v419
    %v443 = vsub.f32 %v52, %v403
    %v444 = vsub.f32 %v53, %v403
    %v445 = vmul.f32 %v441, %v431
    %v446 = vmul.f32 %v442, %v431
    %v447 = vmul.f32 %v443, %v435
    %v448 = vmul.f32 %v444, %v435
    %v449 = vadd.f32 %v445, %v447
    %v450 = vadd.f32 %v446, %v448
    %v451 = vmax.f32 %v449, 0.0
    %v452 = vmax.f32 %v450, 0.0
    %v453 = vmin.f32 %v451, 1.0
    %v454 = vmin.f32 %v452, 1.0
    %v455 = vmul.f32 %v453, %v423
    %v456 = vmul.f32 %v454, %v423
    %v457 = vsub.f32 %v441, %v455
    %v458 = vsub.f32 %v442, %v456
    %v459 = vmul.f32 %v453, %v427
    %v460 = vmul.f32 %v454, %v427
    %v461 = vsub.f32 %v443, %v459
    %v462 = vsub.f32 %v444, %v460
    %v463 = vmul.f32 %v457, %v457
    %v464 = vmul.f32 %v458, %v458
    %v465 = vmul.f32 %v461, %v461
    %v466 = vmul.f32 %v462, %v462
    %v467 = vadd.f32 %v463, %v465
    %v468 = vadd.f32 %v464, %v466
    %v469 = vmin.f32 %v399, %v467
    %v470 = vmin.f32 %v400, %v468
    %471 = vset.pattern.permute.xlu0 43
    %472 = vperm.xlu0 %471, %v56
    %v473 = vpop.permute.xlu0 %472
    %vm475 = vcmp.gt.f32.partialorder %v473, %v52
    %vm476 = vcmp.gt.f32.partialorder %v473, %v53
    %vm477 = vmxor %vm405, %vm475
    %vm478 = vmxor %vm406, %vm476
    %v479 = vmul.f32 %v443, %v439
    %v480 = vmul.f32 %v444, %v439
    %vm481 = vcmp.lt.f32.partialorder %v441, %v479
    %vm482 = vcmp.lt.f32.partialorder %v442, %v480
    %vm483 = vmand %vm477, %vm481
    %vm484 = vmand %vm478, %vm482
    %vm485 = vmxor %vm415, %vm483
    %vm486 = vmxor %vm416, %vm484
    %487 = vset.pattern.permute.xlu0 42
    %488 = vperm.xlu0 %487, %v56
    %v489 = vpop.permute.xlu0 %488
    %491 = vset.pattern.permute.xlu0 44
    %492 = vperm.xlu0 %491, %v56
    %v493 = vpop.permute.xlu0 %492
    %495 = vset.pattern.permute.xlu0 45
    %496 = vperm.xlu0 %495, %v56
    %v497 = vpop.permute.xlu0 %496
    %499 = vset.pattern.permute.xlu0 46
    %500 = vperm.xlu0 %499, %v56
    %v501 = vpop.permute.xlu0 %500
    %503 = vset.pattern.permute.xlu0 47
    %504 = vperm.xlu0 %503, %v56
    %v505 = vpop.permute.xlu0 %504
    %507 = vset.pattern.permute.xlu0 48
    %508 = vperm.xlu0 %507, %v56
    %v509 = vpop.permute.xlu0 %508
    %v511 = vsub.f32 %v48, %v489
    %v512 = vsub.f32 %v49, %v489
    %v513 = vsub.f32 %v52, %v473
    %v514 = vsub.f32 %v53, %v473
    %v515 = vmul.f32 %v511, %v501
    %v516 = vmul.f32 %v512, %v501
    %v517 = vmul.f32 %v513, %v505
    %v518 = vmul.f32 %v514, %v505
    %v519 = vadd.f32 %v515, %v517
    %v520 = vadd.f32 %v516, %v518
    %v521 = vmax.f32 %v519, 0.0
    %v522 = vmax.f32 %v520, 0.0
    %v523 = vmin.f32 %v521, 1.0
    %v524 = vmin.f32 %v522, 1.0
    %v525 = vmul.f32 %v523, %v493
    %v526 = vmul.f32 %v524, %v493
    %v527 = vsub.f32 %v511, %v525
    %v528 = vsub.f32 %v512, %v526
    %v529 = vmul.f32 %v523, %v497
    %v530 = vmul.f32 %v524, %v497
    %v531 = vsub.f32 %v513, %v529
    %v532 = vsub.f32 %v514, %v530
    %v533 = vmul.f32 %v527, %v527
    %v534 = vmul.f32 %v528, %v528
    %v535 = vmul.f32 %v531, %v531
    %v536 = vmul.f32 %v532, %v532
    %v537 = vadd.f32 %v533, %v535
    %v538 = vadd.f32 %v534, %v536
    %v539 = vmin.f32 %v469, %v537
    %v540 = vmin.f32 %v470, %v538
    %541 = vset.pattern.permute.xlu0 50
    %542 = vperm.xlu0 %541, %v56
    %v543 = vpop.permute.xlu0 %542
    %vm545 = vcmp.gt.f32.partialorder %v543, %v52
    %vm546 = vcmp.gt.f32.partialorder %v543, %v53
    %vm547 = vmxor %vm475, %vm545
    %vm548 = vmxor %vm476, %vm546
    %v549 = vmul.f32 %v513, %v509
    %v550 = vmul.f32 %v514, %v509
    %vm551 = vcmp.lt.f32.partialorder %v511, %v549
    %vm552 = vcmp.lt.f32.partialorder %v512, %v550
    %vm553 = vmand %vm547, %vm551
    %vm554 = vmand %vm548, %vm552
    %vm555 = vmxor %vm485, %vm553
    %vm556 = vmxor %vm486, %vm554
    %557 = vset.pattern.permute.xlu0 49
    %558 = vperm.xlu0 %557, %v56
    %v559 = vpop.permute.xlu0 %558
    %561 = vset.pattern.permute.xlu0 51
    %562 = vperm.xlu0 %561, %v56
    %v563 = vpop.permute.xlu0 %562
    %565 = vset.pattern.permute.xlu0 52
    %566 = vperm.xlu0 %565, %v56
    %v567 = vpop.permute.xlu0 %566
    %569 = vset.pattern.permute.xlu0 53
    %570 = vperm.xlu0 %569, %v56
    %v571 = vpop.permute.xlu0 %570
    %573 = vset.pattern.permute.xlu0 54
    %574 = vperm.xlu0 %573, %v56
    %v575 = vpop.permute.xlu0 %574
    %577 = vset.pattern.permute.xlu0 55
    %578 = vperm.xlu0 %577, %v56
    %v579 = vpop.permute.xlu0 %578
    %v581 = vsub.f32 %v48, %v559
    %v582 = vsub.f32 %v49, %v559
    %v583 = vsub.f32 %v52, %v543
    %v584 = vsub.f32 %v53, %v543
    %v585 = vmul.f32 %v581, %v571
    %v586 = vmul.f32 %v582, %v571
    %v587 = vmul.f32 %v583, %v575
    %v588 = vmul.f32 %v584, %v575
    %v589 = vadd.f32 %v585, %v587
    %v590 = vadd.f32 %v586, %v588
    %v591 = vmax.f32 %v589, 0.0
    %v592 = vmax.f32 %v590, 0.0
    %v593 = vmin.f32 %v591, 1.0
    %v594 = vmin.f32 %v592, 1.0
    %v595 = vmul.f32 %v593, %v563
    %v596 = vmul.f32 %v594, %v563
    %v597 = vsub.f32 %v581, %v595
    %v598 = vsub.f32 %v582, %v596
    %v599 = vmul.f32 %v593, %v567
    %v600 = vmul.f32 %v594, %v567
    %v601 = vsub.f32 %v583, %v599
    %v602 = vsub.f32 %v584, %v600
    %v603 = vmul.f32 %v597, %v597
    %v604 = vmul.f32 %v598, %v598
    %v605 = vmul.f32 %v601, %v601
    %v606 = vmul.f32 %v602, %v602
    %v607 = vadd.f32 %v603, %v605
    %v608 = vadd.f32 %v604, %v606
    %v609 = vmin.f32 %v539, %v607
    %v610 = vmin.f32 %v540, %v608
    %vm611 = vmxor %vm545, %vm67
    %vm612 = vmxor %vm546, %vm68
    %v613 = vmul.f32 %v583, %v579
    %v614 = vmul.f32 %v584, %v579
    %vm615 = vcmp.lt.f32.partialorder %v581, %v613
    %vm616 = vcmp.lt.f32.partialorder %v582, %v614
    %vm617 = vmand %vm611, %vm615
    %vm618 = vmand %vm612, %vm616
    %vm619 = vmxor %vm555, %vm617
    %vm620 = vmxor %vm556, %vm618
    %v621 = vsel %vm619, 0.05, -0.05
    %v622 = vsel %vm620, 0.05, -0.05
    %v623 = vmul.f32 %v621, %v609
    %v624 = vmul.f32 %v622, %v610
    %v625 = vtanh.pop %v623
    %v626 = vtanh.pop %v624
    %v627 = vmul.f32 %v625, 0.5
    %v628 = vmul.f32 %v626, 0.5
    %v629 = vadd.f32 %v627, 0.5
    %v630 = vadd.f32 %v628, 0.5
    %v631 = vmax.f32 %v629, 1e-05
    %v632 = vmax.f32 %v630, 1e-05
    %v633 = vmin.f32 %v631, 0.99999
    %v634 = vmin.f32 %v632, 0.99999
    %s635 = smul.addr %s57, 8
    %s636 = scalar_lea.vmem [#allocation7], %s635
    %637 = vst [vmem:[%s636] sm:$0xff] %v633
    %638 = vst [vmem:[%s636 + $0x8] sm:$0xff] %v634
    %v639 = vmul.f32 %v633, %v60
    %v640 = vmul.f32 %v634, %v61
    %v641 = vadd.f32 %v639, 0.0
    %v642 = vadd.f32 %v640, 0.0
    %s643 = smul.u32 0, 8
    %s644 = sadd.s32 %s643, 0
    %v645 = vstv %s644
    %v646 = vadd.s32 %v645, %v55
    %vm647 = vcmp.lt.s32.totalorder %v646, 2
    %v648 = vsel %vm647, 1, 0
    %v649 = vcvt.s32.f32 %v648
    %v650 = vmul.f32 %v633, %v649
    %v651 = vmul.f32 %v634, %v649
    %v652 = vadd.f32 %v650, 0.0
    %v653 = vadd.f32 %v651, 0.0
    %v654 = vadd.f32 %v641, %v642
    %655 = vst [vmem:[#allocation8] sm:$0xff] %v654
    %v656 = vadd.f32 %v652, %v653
    %657 = vst [vmem:[#allocation8 + $0x8] sm:$0xff] %v656
    // Predicated region
    $region18: #{tpu_custom_call.1} parent=1 // pred_check
      _
    $region19: #{tpu_custom_call.1} parent=1 // pred_check_branch
      %659 = sbr.rel (0) target = $region21
    $region20: #{tpu_custom_call.1} parent=1 // pred_region
      %661 = vsyncadd [#allocation4], 0
      %s663 = sshll.u32 [#allocation7], 4
      %s664 = int_to_ptr.vmem [resolvable:$true] %s663
      %s665 = sshll.u32 %s2, 4
      %s666 = int_to_ptr.hbm [resolvable:$true] %s665
      %668 = dma.vmem_to_hbm [thread:$0]  %s664, 256, %s666, [#allocation4]
    $region21: #{tpu_custom_call.1} parent=1 // pred_fallthru
      _
    // Predicated region
    $region22: #{tpu_custom_call.1} parent=1 // pred_check
      _
    $region23: #{tpu_custom_call.1} parent=1 // pred_check_branch
      %670 = sbr.rel (0) target = $region25
    $region24: #{tpu_custom_call.1} parent=1 // pred_region
      %672 = vsyncadd [#allocation9], 0
      %s673 = sshll.u32 [#allocation8], 4
      %s674 = int_to_ptr.vmem [resolvable:$true] %s673
      %s675 = sshll.u32 %s3, 4
      %s676 = int_to_ptr.hbm [resolvable:$true] %s675
      %681 = dma.vmem_to_hbm [thread:$0]  %s674, 256, %s676, [#allocation9], 128, 128, 8
    $region25: #{tpu_custom_call.1} parent=1 // pred_fallthru
      _
    // Predicated region
    $region26: #{tpu_custom_call.1} parent=1 // pred_check
      _
    $region27: #{tpu_custom_call.1} parent=1 // pred_check_branch
      %683 = sbr.rel (0) target = $region29
    $region28: #{tpu_custom_call.1} parent=1 // pred_region
      %685 = dma.done [#allocation4], 256
    $region29: #{tpu_custom_call.1} parent=1 // pred_fallthru
      _
    // Predicated region
    $region30: #{tpu_custom_call.1} parent=1 // pred_check
      _
    $region31: #{tpu_custom_call.1} parent=1 // pred_check_branch
      %687 = sbr.rel (0) target = $region33
    $region32: #{tpu_custom_call.1} parent=1 // pred_region
      %689 = dma.done [#allocation9], 256
    $region33: #{tpu_custom_call.1} parent=1 // pred_fallthru
      _
    %690 = vsyncpa [#allocation3], 1
    %691 = vsyncpa [#allocation6], 1
    %692 = vsyncpa [#allocation4], 1
    %693 = vsyncpa [#allocation9], 1

</llo_original>
